<compile_context>
chip_gen: v6e
topology: v6e:2x2x1
jax: 0.10.0
libtpu: 0.0.40
codegen_flags: <defaults>
</compile_context>

<pallas_src>
import jax
import jax.numpy as jnp
from jax.experimental import pallas as pl
from jax.experimental.pallas import tpu as pltpu

LANE = 128       # lane width of a vreg / MXU tile edge
SUBLANE = 8      # sublane width of a vreg (f32)
OUT_LANES = 128  # lane-dense output block width


def _round_up(x, m):
    return (x + m - 1) // m * m


def _pad2(x, rows, cols):
    r, c = x.shape
    if r == rows and c == cols:
        return x
    return jnp.pad(x, ((0, rows - r), (0, cols - c)))


def _apply_activation(x, name):
    # activation(0) == 0 for all supported choices, so zero padding stays exact.
    if name == "relu":
        return jnp.maximum(x, 0.0)
    if name == "tanh":
        return jnp.tanh(x)
    if name == "leaky_relu":
        return jnp.where(x >= 0.0, x, 0.01 * x)
    if name == "gelu":
        # torch.nn.functional.gelu default = exact erf; keep it (v5e note: the
        # tanh approximation would be cheaper but changes numerics).
        return jax.nn.gelu(x, approximate=False)
    return jnp.maximum(x, 0.0)


# ----------------------------------------------------------------------------
# Pallas kernel
# ----------------------------------------------------------------------------
def _make_critic_kernel(num_extra_combined, activation):
    """Fused critic forward.

    Ref order:
      x (packed [state | action], lane-padded),
      w1, b1,                      # state layer (W1 laid over the packed axis)
      w2_s, w2_a, b2,              # first combined layer (concat-free)
      (w_i, b_i) * num_extra_combined,
      w_out_rep, b_out_rep,        # output layer, column-replicated to 128 lanes
      q_out                        # (TILE_B, OUT_LANES) lane-dense output
    """

    def kernel(*args):
        refs, q_ref = args[:-1], args[-1]
        (x_ref, w1_ref, b1_ref, w2s_ref, w2a_ref, b2_ref) = refs[:6]
        rest = refs[6:]
        f32 = jnp.float32

        x = x_ref[...]                                   # (TILE_B, SA_pad)

        # state layer + activation (action rows of W1 are zero -> exact)
        h = jnp.dot(x, w1_ref[...], preferred_element_type=f32) + b1_ref[...]
        h = _apply_activation(h, activation).astype(w2s_ref.dtype)

        # first combined layer: cat([h, action]) @ W2 + b2, concat-free.
        # w2_a is laid over the packed input axis (state rows are zero), so
        # x @ w2_a == action @ W2[action_part].
        h = (jnp.dot(h, w2s_ref[...], preferred_element_type=f32)
             + jnp.dot(x, w2a_ref[...], preferred_element_type=f32)
             + b2_ref[...])
        h = _apply_activation(h, activation)

        # remaining combined layers
        idx = 0
        for _ in range(num_extra_combined):
            w_ref, b_ref = rest[idx], rest[idx + 1]
            idx += 2
            h = jnp.dot(h.astype(w_ref.dtype), w_ref[...],
                        preferred_element_type=f32) + b_ref[...]
            h = _apply_activation(h, activation)

        # output layer (out_features == 1): single MXU matmul against the
        # column-replicated weight -> Q already broadcast over 128 lanes.
        w_out_ref, b_out_ref = rest[idx], rest[idx + 1]
        q = jnp.dot(h.astype(w_out_ref.dtype), w_out_ref[...],
                    preferred_element_type=f32) + b_out_ref[...]
        q_ref[...] = q.astype(q_ref.dtype)               # unmasked vst

    return kernel


# ----------------------------------------------------------------------------
# One-time parameter preparation (pad + lay out over the packed input axis)
# ----------------------------------------------------------------------------
def prepare_critic_params(params, weight_dtype=jnp.bfloat16):
    """Pad to lane multiples and lay params out for the kernel. Call once.

    Default bf16 weights/activations (f32 MXU accumulation, f32 biases).
    Pass weight_dtype=jnp.float32 for an exact-f32 path.
    """
    s = params["w1"].shape[0]
    h0 = params["w1"].shape[1]
    a = params["w2"].shape[0] - h0
    sa_pad = _round_up(s + a, LANE)
    h0_p = _round_up(h0, LANE)
    wd = weight_dtype

    prep = {"state_dim": s, "action_dim": a, "sa_pad": sa_pad,
            "compute_dtype": wd}

    # W1 laid over the packed [state | action] input: action rows are zero.
    w1 = jnp.zeros((sa_pad, h0_p), jnp.float32).at[:s, :h0].set(params["w1"])
    prep["w1"] = w1.astype(wd)
    prep["b1"] = _pad2(params["b1"], 1, h0_p).astype(jnp.float32)

    w2 = params["w2"]
    h1 = w2.shape[1]
    h1_p = _round_up(h1, LANE)
    prep["w2_s"] = _pad2(w2[:h0, :], h0_p, h1_p).astype(wd)
    # Action part of W2 laid over the packed input axis: rows [s:s+a].
    w2a = jnp.zeros((sa_pad, h1_p), jnp.float32).at[s:s + a, :h1].set(w2[h0:, :])
    prep["w2_a"] = w2a.astype(wd)
    prep["b2"] = _pad2(params["b2"], 1, h1_p).astype(jnp.float32)

    prev_p = h1_p
    extra = []
    for (w, b) in params["w_extra"]:
        hi_p = _round_up(w.shape[1], LANE)
        extra.append((_pad2(w, prev_p, hi_p).astype(wd),
                      _pad2(b, 1, hi_p).astype(jnp.float32)))
        prev_p = hi_p
    prep["extra"] = extra

    # Output layer: replicate the single w_out column (and bias) across
    # OUT_LANES columns so a single MXU matmul yields Q broadcast over lanes.
    w_out_col = _pad2(params["w_out"], prev_p, 1)            # (H_last_pad, 1)
    prep["w_out"] = jnp.tile(w_out_col, (1, OUT_LANES)).astype(wd)
    prep["b_out"] = jnp.tile(params["b_out"].reshape(1, 1),
                             (1, OUT_LANES)).astype(jnp.float32)
    return prep


# ----------------------------------------------------------------------------
# Host-side wrapper
# ----------------------------------------------------------------------------
def critic_forward(state, action, prep, *, activation="relu", tile_b_max=1024):
    """Run the fused critic forward pass on prepared params. Returns (B, 1)."""
    B = state.shape[0]
    sa_pad = prep["sa_pad"]
    cd = prep["compute_dtype"]

    # Batch tiling: big tiles (step overhead dominates this tiny MLP), but keep
    # >= 2 grid steps whenever the batch allows so v7x's two TCs both get work.
    # bf16 packs two rows per sublane -> 16-row minimum tile for unmasked vregs.
    min_tile = 16 if jnp.dtype(cd).itemsize < 4 else SUBLANE
    b_align = _round_up(B, min_tile)
    if b_align >= 2 * min_tile:
        tile_b = min(_round_up(max(b_align // 2, min_tile), min_tile), tile_b_max)
    else:
        tile_b = b_align
    b_pad = _round_up(B, tile_b)

    # Pack state+action into one lane-padded input stream (single DMA per step).
    x = jnp.concatenate([state.astype(jnp.float32),
                         action.astype(jnp.float32)], axis=1)
    x = _pad2(x, b_pad, sa_pad).astype(cd)

    inputs = [x,
              prep["w1"], prep["b1"],
              prep["w2_s"], prep["w2_a"], prep["b2"]]
    for (w, b) in prep["extra"]:
        inputs.extend([w, b])
    inputs.extend([prep["w_out"], prep["b_out"]])

    kernel = _make_critic_kernel(len(prep["extra"]), activation)

    def resident_spec(arr):
        # Full-array block with a constant index map: DMA'd once, stays in
        # VMEM across all grid iterations (no re-fetch of weights).
        return pl.BlockSpec(arr.shape, lambda i: (0, 0))

    in_specs = [pl.BlockSpec((tile_b, sa_pad), lambda i: (i, 0))]
    in_specs += [resident_spec(a) for a in inputs[1:]]
    out_spec = pl.BlockSpec((tile_b, OUT_LANES), lambda i: (i, 0))

    grid = (b_pad // tile_b,)

    q_pad = pl.pallas_call(
        kernel,
        out_shape=jax.ShapeDtypeStruct((b_pad, OUT_LANES), jnp.float32),
        grid=grid,
        in_specs=in_specs,
        out_specs=out_spec,
        compiler_params=pltpu.CompilerParams(
            # batch tiles are independent -> shard across TCs on v7x
            dimension_semantics=("parallel",),
            # explicit VMEM budget (weights + double-buffered tiles << 32 MiB)
            vmem_limit_bytes=32 * 1024 * 1024,
        ),
    )(*inputs)

    # Drop batch padding and the lane broadcast of Q.
    return q_pad[:B, :1]


# ----------------------------------------------------------------------------
# Deterministic parameter init (PyTorch Linear default-style uniform bounds)
# ----------------------------------------------------------------------------
def init_params(key, state_dim, action_dim, hidden_units):
    def linear(key, fan_in, fan_out):
        kw, kb = jax.random.split(key)
        bound = 1.0 / jnp.sqrt(jnp.float32(fan_in))
        w = jax.random.uniform(kw, (fan_in, fan_out), jnp.float32, -bound, bound)
        b = jax.random.uniform(kb, (1, fan_out), jnp.float32, -bound, bound)
        return w, b

    keys = jax.random.split(key, len(hidden_units) + 1)

    params = {}
    params["w1"], params["b1"] = linear(keys[0], state_dim, hidden_units[0])

    combined_dim = hidden_units[0] + action_dim
    params["w2"], params["b2"] = linear(keys[1], combined_dim, hidden_units[1])

    params["w_extra"] = []
    for i in range(2, len(hidden_units)):
        w, b = linear(keys[i], hidden_units[i - 1], hidden_units[i])
        params["w_extra"].append((w, b))

    params["w_out"], params["b_out"] = linear(keys[-1], hidden_units[-1], 1)
    return params


# ----------------------------------------------------------------------------
# Pure-JAX reference (mirrors the PyTorch forward exactly, f32)
# ----------------------------------------------------------------------------
def critic_reference(state, action, params, activation="relu"):
    h = _apply_activation(state @ params["w1"] + params["b1"], activation)
    x = jnp.concatenate([h, action], axis=1)
    h = _apply_activation(x @ params["w2"] + params["b2"], activation)
    for (w, b) in params["w_extra"]:
        h = _apply_activation(h @ w + b, activation)
    return h @ params["w_out"] + params["b_out"]


if __name__ == "__main__":
    # Small shapes consistent with the module's forward:
    #   state (B, state_dim), action (B, action_dim), q (B, 1)
    state_dim, action_dim = 16, 8
    hidden_units = [32, 32, 32]   # 1 state layer + 2 combined layers

    key = jax.random.PRNGKey(0)
    k_s, k_a, k_p = jax.random.split(key, 3)
    params = init_params(k_p, state_dim, action_dim, hidden_units)

    # --- exact f32 path, tiny batch (single tile) -------------------------
    B = 8
    state = jax.random.normal(k_s, (B, state_dim), jnp.float32)
    action = jax.random.normal(k_a, (B, action_dim), jnp.float32)

    prep_f32 = prepare_critic_params(params, weight_dtype=jnp.float32)
    q = jax.block_until_ready(critic_forward(state, action, prep_f32,
                                             activation="relu"))
    q_ref = critic_reference(state, action, params, activation="relu")
    assert q.shape == (B, 1), q.shape
    assert jnp.allclose(q, q_ref, atol=1e-5, rtol=1e-5), (q, q_ref)

    # --- default bf16 path, batch that exercises the 2-step grid ----------
    B2 = 40
    state2 = jax.random.normal(k_s, (B2, state_dim), jnp.float32)
    action2 = jax.random.normal(k_a, (B2, action_dim), jnp.float32)

    prep_bf16 = prepare_critic_params(params)   # bf16 weights/activations
    q2 = jax.block_until_ready(critic_forward(state2, action2, prep_bf16,
                                              activation="relu"))
    q2_ref = critic_reference(state2, action2, params, activation="relu")
    assert q2.shape == (B2, 1), q2.shape
    # bf16 compute with f32 accumulation -> loose tolerance vs the f32 reference
    assert jnp.allclose(q2, q2_ref, atol=5e-2, rtol=5e-2), (q2, q2_ref)

    print("KERNEL_OK")
</pallas_src>

<mosaic_0001>
module attributes {stable_mosaic.version = 11 : i64} {
  func.func @kernel(%arg0: i32, %arg1: memref<8x128xf32, #tpu.memory_space<vmem>>, %arg2: memref<128x128xf32, #tpu.memory_space<vmem>>, %arg3: memref<1x128xf32, #tpu.memory_space<vmem>>, %arg4: memref<128x128xf32, #tpu.memory_space<vmem>>, %arg5: memref<128x128xf32, #tpu.memory_space<vmem>>, %arg6: memref<1x128xf32, #tpu.memory_space<vmem>>, %arg7: memref<128x128xf32, #tpu.memory_space<vmem>>, %arg8: memref<1x128xf32, #tpu.memory_space<vmem>>, %arg9: memref<128x128xf32, #tpu.memory_space<vmem>>, %arg10: memref<1x128xf32, #tpu.memory_space<vmem>>, %arg11: memref<8x128xf32, #tpu.memory_space<vmem>>) attributes {dimension_semantics = [#tpu.dimension_semantics<parallel>], iteration_bounds = array<i64: 1>, scalar_prefetch = 0 : i64, scratch_operands = 0 : i64, tpu.core_type = #tpu.core_type<tc>, window_params = [{transform_indices = @transform_0, window_bounds = array<i64: 8, 128>}, {pipeline_mode = #tpu.pipeline_mode<synchronous>, transform_indices = @transform_1, window_bounds = array<i64: 128, 128>}, {pipeline_mode = #tpu.pipeline_mode<synchronous>, transform_indices = @transform_2, window_bounds = array<i64: 1, 128>}, {pipeline_mode = #tpu.pipeline_mode<synchronous>, transform_indices = @transform_3, window_bounds = array<i64: 128, 128>}, {pipeline_mode = #tpu.pipeline_mode<synchronous>, transform_indices = @transform_4, window_bounds = array<i64: 128, 128>}, {pipeline_mode = #tpu.pipeline_mode<synchronous>, transform_indices = @transform_5, window_bounds = array<i64: 1, 128>}, {pipeline_mode = #tpu.pipeline_mode<synchronous>, transform_indices = @transform_6, window_bounds = array<i64: 128, 128>}, {pipeline_mode = #tpu.pipeline_mode<synchronous>, transform_indices = @transform_7, window_bounds = array<i64: 1, 128>}, {pipeline_mode = #tpu.pipeline_mode<synchronous>, transform_indices = @transform_8, window_bounds = array<i64: 128, 128>}, {pipeline_mode = #tpu.pipeline_mode<synchronous>, transform_indices = @transform_9, window_bounds = array<i64: 1, 128>}, {transform_indices = @transform_10, window_bounds = array<i64: 8, 128>}]} {
    %c0 = arith.constant 0 : index
    %c0_0 = arith.constant 0 : index
    %0 = vector.load %arg1[%c0, %c0_0] : memref<8x128xf32, #tpu.memory_space<vmem>>, vector<8x128xf32>
    %c0_1 = arith.constant 0 : index
    %c0_2 = arith.constant 0 : index
    %1 = vector.load %arg2[%c0_1, %c0_2] : memref<128x128xf32, #tpu.memory_space<vmem>>, vector<128x128xf32>
    %cst = arith.constant dense<0.000000e+00> : vector<8x128xf32>
    %2 = tpu.matmul %0, %1, %cst {dimension_numbers = #tpu.dot_dimension_numbers<[1], [0], [0], [1], [0, 0, 1, 1], [], []>} : vector<8x128xf32>, vector<128x128xf32>, vector<8x128xf32> -> vector<8x128xf32>
    %c0_3 = arith.constant 0 : index
    %c0_4 = arith.constant 0 : index
    %3 = vector.load %arg3[%c0_3, %c0_4] : memref<1x128xf32, #tpu.memory_space<vmem>>, vector<1x128xf32>
    %4 = vector.broadcast %3 : vector<1x128xf32> to vector<8x128xf32>
    %5 = arith.addf %2, %4 : vector<8x128xf32>
    %cst_5 = arith.constant 0.000000e+00 : f32
    %6 = vector.broadcast %cst_5 : f32 to vector<8x128xf32>
    %7 = arith.maximumf %5, %6 : vector<8x128xf32>
    %c0_6 = arith.constant 0 : index
    %c0_7 = arith.constant 0 : index
    %8 = vector.load %arg4[%c0_6, %c0_7] : memref<128x128xf32, #tpu.memory_space<vmem>>, vector<128x128xf32>
    %cst_8 = arith.constant dense<0.000000e+00> : vector<8x128xf32>
    %9 = tpu.matmul %7, %8, %cst_8 {dimension_numbers = #tpu.dot_dimension_numbers<[1], [0], [0], [1], [0, 0, 1, 1], [], []>} : vector<8x128xf32>, vector<128x128xf32>, vector<8x128xf32> -> vector<8x128xf32>
    %c0_9 = arith.constant 0 : index
    %c0_10 = arith.constant 0 : index
    %10 = vector.load %arg5[%c0_9, %c0_10] : memref<128x128xf32, #tpu.memory_space<vmem>>, vector<128x128xf32>
    %cst_11 = arith.constant dense<0.000000e+00> : vector<8x128xf32>
    %11 = tpu.matmul %0, %10, %cst_11 {dimension_numbers = #tpu.dot_dimension_numbers<[1], [0], [0], [1], [0, 0, 1, 1], [], []>} : vector<8x128xf32>, vector<128x128xf32>, vector<8x128xf32> -> vector<8x128xf32>
    %12 = arith.addf %9, %11 : vector<8x128xf32>
    %c0_12 = arith.constant 0 : index
    %c0_13 = arith.constant 0 : index
    %13 = vector.load %arg6[%c0_12, %c0_13] : memref<1x128xf32, #tpu.memory_space<vmem>>, vector<1x128xf32>
    %14 = vector.broadcast %13 : vector<1x128xf32> to vector<8x128xf32>
    %15 = arith.addf %12, %14 : vector<8x128xf32>
    %cst_14 = arith.constant 0.000000e+00 : f32
    %16 = vector.broadcast %cst_14 : f32 to vector<8x128xf32>
    %17 = arith.maximumf %15, %16 : vector<8x128xf32>
    %c0_15 = arith.constant 0 : index
    %c0_16 = arith.constant 0 : index
    %18 = vector.load %arg7[%c0_15, %c0_16] : memref<128x128xf32, #tpu.memory_space<vmem>>, vector<128x128xf32>
    %cst_17 = arith.constant dense<0.000000e+00> : vector<8x128xf32>
    %19 = tpu.matmul %17, %18, %cst_17 {dimension_numbers = #tpu.dot_dimension_numbers<[1], [0], [0], [1], [0, 0, 1, 1], [], []>} : vector<8x128xf32>, vector<128x128xf32>, vector<8x128xf32> -> vector<8x128xf32>
    %c0_18 = arith.constant 0 : index
    %c0_19 = arith.constant 0 : index
    %20 = vector.load %arg8[%c0_18, %c0_19] : memref<1x128xf32, #tpu.memory_space<vmem>>, vector<1x128xf32>
    %21 = vector.broadcast %20 : vector<1x128xf32> to vector<8x128xf32>
    %22 = arith.addf %19, %21 : vector<8x128xf32>
    %cst_20 = arith.constant 0.000000e+00 : f32
    %23 = vector.broadcast %cst_20 : f32 to vector<8x128xf32>
    %24 = arith.maximumf %22, %23 : vector<8x128xf32>
    %c0_21 = arith.constant 0 : index
    %c0_22 = arith.constant 0 : index
    %25 = vector.load %arg9[%c0_21, %c0_22] : memref<128x128xf32, #tpu.memory_space<vmem>>, vector<128x128xf32>
    %cst_23 = arith.constant dense<0.000000e+00> : vector<8x128xf32>
    %26 = tpu.matmul %24, %25, %cst_23 {dimension_numbers = #tpu.dot_dimension_numbers<[1], [0], [0], [1], [0, 0, 1, 1], [], []>} : vector<8x128xf32>, vector<128x128xf32>, vector<8x128xf32> -> vector<8x128xf32>
    %c0_24 = arith.constant 0 : index
    %c0_25 = arith.constant 0 : index
    %27 = vector.load %arg10[%c0_24, %c0_25] : memref<1x128xf32, #tpu.memory_space<vmem>>, vector<1x128xf32>
    %28 = vector.broadcast %27 : vector<1x128xf32> to vector<8x128xf32>
    %29 = arith.addf %26, %28 : vector<8x128xf32>
    %c0_26 = arith.constant 0 : index
    %c0_27 = arith.constant 0 : index
    %30 = vector.load %arg11[%c0_26, %c0_27] : memref<8x128xf32, #tpu.memory_space<vmem>>, vector<8x128xf32>
    tpu.vector_store %arg11[%c0_26, %c0_27], %29 {strides = array<i32>} : memref<8x128xf32, #tpu.memory_space<vmem>>, vector<8x128xf32>,
    return
  }
  func.func @transform_0(%arg0: i32) -> (i32, i32) {
    %c0_i32 = arith.constant 0 : i32
    %c0_i32_0 = arith.constant 0 : i32
    return %arg0, %c0_i32 : i32, i32
  }
  func.func @transform_1(%arg0: i32) -> (i32, i32) {
    %c0_i32 = arith.constant 0 : i32
    %c0_i32_0 = arith.constant 0 : i32
    %c0_i32_1 = arith.constant 0 : i32
    return %c0_i32, %c0_i32_0 : i32, i32
  }
  func.func @transform_2(%arg0: i32) -> (i32, i32) {
    %c0_i32 = arith.constant 0 : i32
    %c0_i32_0 = arith.constant 0 : i32
    %c0_i32_1 = arith.constant 0 : i32
    return %c0_i32, %c0_i32_0 : i32, i32
  }
  func.func @transform_3(%arg0: i32) -> (i32, i32) {
    %c0_i32 = arith.constant 0 : i32
    %c0_i32_0 = arith.constant 0 : i32
    %c0_i32_1 = arith.constant 0 : i32
    return %c0_i32, %c0_i32_0 : i32, i32
  }
  func.func @transform_4(%arg0: i32) -> (i32, i32) {
    %c0_i32 = arith.constant 0 : i32
    %c0_i32_0 = arith.constant 0 : i32
    %c0_i32_1 = arith.constant 0 : i32
    return %c0_i32, %c0_i32_0 : i32, i32
  }
  func.func @transform_5(%arg0: i32) -> (i32, i32) {
    %c0_i32 = arith.constant 0 : i32
    %c0_i32_0 = arith.constant 0 : i32
    %c0_i32_1 = arith.constant 0 : i32
    return %c0_i32, %c0_i32_0 : i32, i32
  }
  func.func @transform_6(%arg0: i32) -> (i32, i32) {
    %c0_i32 = arith.constant 0 : i32
    %c0_i32_0 = arith.constant 0 : i32
    %c0_i32_1 = arith.constant 0 : i32
    return %c0_i32, %c0_i32_0 : i32, i32
  }
  func.func @transform_7(%arg0: i32) -> (i32, i32) {
    %c0_i32 = arith.constant 0 : i32
    %c0_i32_0 = arith.constant 0 : i32
    %c0_i32_1 = arith.constant 0 : i32
    return %c0_i32, %c0_i32_0 : i32, i32
  }
  func.func @transform_8(%arg0: i32) -> (i32, i32) {
    %c0_i32 = arith.constant 0 : i32
    %c0_i32_0 = arith.constant 0 : i32
    %c0_i32_1 = arith.constant 0 : i32
    return %c0_i32, %c0_i32_0 : i32, i32
  }
  func.func @transform_9(%arg0: i32) -> (i32, i32) {
    %c0_i32 = arith.constant 0 : i32
    %c0_i32_0 = arith.constant 0 : i32
    %c0_i32_1 = arith.constant 0 : i32
    return %c0_i32, %c0_i32_0 : i32, i32
  }
  func.func @transform_10(%arg0: i32) -> (i32, i32) {
    %c0_i32 = arith.constant 0 : i32
    %c0_i32_0 = arith.constant 0 : i32
    return %arg0, %c0_i32 : i32, i32
  }
}

</mosaic_0001>

<llo_original>
// kernel: tpu_custom_call.1
$region0: #{tpu_custom_call.1}
  #allocation0 [shape = 'u32[]', space=smem, size = 0x4, offset = 0x4, fixed_abs, tag = 'smem constant byte address 0x4 - core index']
  #allocation1 [shape = 'u32[144,128]{1,0:T(1,128)}', space=vmem, size = 0x12000, scoped, tag = 'internal scratch']
  %s0 = inlined_call_operand.hbm [shape: f32[8,128], index: 0, kind: input, shape index: {}]
  %s1 = inlined_call_operand.hbm [shape: f32[128,128], index: 1, kind: input, shape index: {}]
  %s2 = inlined_call_operand.vmem [shape: f32[1,128], index: 2, kind: input, shape index: {}]
  %s3 = inlined_call_operand.hbm [shape: f32[128,128], index: 3, kind: input, shape index: {}]
  %s4 = inlined_call_operand.hbm [shape: f32[128,128], index: 4, kind: input, shape index: {}]
  %s5 = inlined_call_operand.vmem [shape: f32[1,128], index: 5, kind: input, shape index: {}]
  %s6 = inlined_call_operand.hbm [shape: f32[128,128], index: 6, kind: input, shape index: {}]
  %s7 = inlined_call_operand.vmem [shape: f32[1,128], index: 7, kind: input, shape index: {}]
  %s8 = inlined_call_operand.hbm [shape: f32[128,128], index: 8, kind: input, shape index: {}]
  %s9 = inlined_call_operand.vmem [shape: f32[1,128], index: 9, kind: input, shape index: {}]
  %s10 = inlined_call_operand.hbm [shape: f32[8,128], index: 10, kind: output, shape index: {}]
  %s11 = sld [smem:[#allocation0]]
  $region74: #{tpu_custom_call.1} parent=0
    _
  %s13 = ssub.s32 1, %s11
  %s14 = scalar_select 0, %s13, %s11
  $region1: #{tpu_custom_call.1} parent=0
    #allocation2 [shape = 'u8[4096]{0}', space=vmem, size = 0x1000, scoped, tag = 'input window, operand 0, single buffered']
    #allocation3 [shape = 's32[1]{0}', space=sflag, size = 0x4, scoped, tag = 'scoped memory for tpu_custom_call.1']
    #allocation4 [shape = 's32[1]{0}', space=sflag, size = 0x4, scoped, tag = 'scoped memory for tpu_custom_call.1']
    #allocation5 [shape = 'u8[65536]{0}', space=vmem, size = 0x10000, scoped, tag = 'input window, operand 1, single buffered']
    #allocation6 [shape = 's32[1]{0}', space=sflag, size = 0x4, scoped, tag = 'scoped memory for tpu_custom_call.1']
    #allocation7 [shape = 'u8[65536]{0}', space=vmem, size = 0x10000, scoped, tag = 'input window, operand 3, single buffered']
    #allocation8 [shape = 'u8[65536]{0}', space=vmem, size = 0x10000, scoped, tag = 'input window, operand 4, single buffered']
    #allocation9 [shape = 's32[1]{0}', space=sflag, size = 0x4, scoped, tag = 'scoped memory for tpu_custom_call.1']
    #allocation10 [shape = 'u8[65536]{0}', space=vmem, size = 0x10000, scoped, tag = 'input window, operand 6, single buffered']
    #allocation11 [shape = 'u8[65536]{0}', space=vmem, size = 0x10000, scoped, tag = 'input window, operand 8, single buffered']
    #allocation12 [shape = 's32[1]{0}', space=sflag, size = 0x4, scoped, tag = 'scoped memory for tpu_custom_call.1']
    #allocation13 [shape = 'u8[4096]{0}', space=vmem, size = 0x1000, scoped, tag = 'output window, operand 0, single buffered']
    %15 = vsyncpa [#allocation3], 0
    %16 = vsyncpa [#allocation6], 0
    %17 = vsyncpa [#allocation9], 0
    %18 = vsyncpa [#allocation12], 0
    %19 = vsyncpa [#allocation4], 0
    // Predicated region
    $region2: #{tpu_custom_call.1} parent=1 // pred_check
      _
    $region3: #{tpu_custom_call.1} parent=1 // pred_check_branch
      %21 = sbr.rel (0) target = $region5
    $region4: #{tpu_custom_call.1} parent=1 // pred_region
      %s23 = ssub.s32 128, 128
      %24 = vsyncadd [#allocation3], %s23
      %s26 = sshll.u32 [#allocation2], 4
      %s27 = int_to_ptr.vmem [resolvable:$true] %s26
      %29 = dma.hbm_to_vmem [thread:$0]  %s0, 128, %s27, [#allocation3]
    $region5: #{tpu_custom_call.1} parent=1 // pred_fallthru
      _
    // Predicated region
    $region6: #{tpu_custom_call.1} parent=1 // pred_check
      _
    $region7: #{tpu_custom_call.1} parent=1 // pred_check_branch
      %31 = sbr.rel (0) target = $region9
    $region8: #{tpu_custom_call.1} parent=1 // pred_region
      %s33 = ssub.s32 2048, 2048
      %34 = vsyncadd [#allocation6], %s33
      %s35 = sshll.u32 [#allocation5], 4
      %s36 = int_to_ptr.vmem [resolvable:$true] %s35
      %41 = dma.hbm_to_vmem [thread:$0]  %s1, 2048, %s36, [#allocation6], 128, 128, 8
    $region9: #{tpu_custom_call.1} parent=1 // pred_fallthru
      _
    // Predicated region
    $region10: #{tpu_custom_call.1} parent=1 // pred_check
      _
    $region11: #{tpu_custom_call.1} parent=1 // pred_check_branch
      %43 = sbr.rel (0) target = $region13
    $region12: #{tpu_custom_call.1} parent=1 // pred_region
      _
    $region13: #{tpu_custom_call.1} parent=1 // pred_fallthru
      _
    // Predicated region
    $region14: #{tpu_custom_call.1} parent=1 // pred_check
      _
    $region15: #{tpu_custom_call.1} parent=1 // pred_check_branch
      %45 = sbr.rel (0) target = $region17
    $region16: #{tpu_custom_call.1} parent=1 // pred_region
      %s47 = ssub.s32 2048, 2048
      %48 = vsyncadd [#allocation6], %s47
      %s49 = sshll.u32 [#allocation7], 4
      %s50 = int_to_ptr.vmem [resolvable:$true] %s49
      %55 = dma.hbm_to_vmem [thread:$0]  %s3, 2048, %s50, [#allocation6], 128, 128, 8
    $region17: #{tpu_custom_call.1} parent=1 // pred_fallthru
      _
    // Predicated region
    $region18: #{tpu_custom_call.1} parent=1 // pred_check
      _
    $region19: #{tpu_custom_call.1} parent=1 // pred_check_branch
      %57 = sbr.rel (0) target = $region21
    $region20: #{tpu_custom_call.1} parent=1 // pred_region
      %s59 = ssub.s32 2048, 2048
      %60 = vsyncadd [#allocation9], %s59
      %s61 = sshll.u32 [#allocation8], 4
      %s62 = int_to_ptr.vmem [resolvable:$true] %s61
      %67 = dma.hbm_to_vmem [thread:$0]  %s4, 2048, %s62, [#allocation9], 128, 128, 8
    $region21: #{tpu_custom_call.1} parent=1 // pred_fallthru
      _
    // Predicated region
    $region22: #{tpu_custom_call.1} parent=1 // pred_check
      _
    $region23: #{tpu_custom_call.1} parent=1 // pred_check_branch
      %69 = sbr.rel (0) target = $region25
    $region24: #{tpu_custom_call.1} parent=1 // pred_region
      _
    $region25: #{tpu_custom_call.1} parent=1 // pred_fallthru
      _
    // Predicated region
    $region26: #{tpu_custom_call.1} parent=1 // pred_check
      _
    $region27: #{tpu_custom_call.1} parent=1 // pred_check_branch
      %71 = sbr.rel (0) target = $region29
    $region28: #{tpu_custom_call.1} parent=1 // pred_region
      %s73 = ssub.s32 2048, 2048
      %74 = vsyncadd [#allocation9], %s73
      %s75 = sshll.u32 [#allocation10], 4
      %s76 = int_to_ptr.vmem [resolvable:$true] %s75
      %81 = dma.hbm_to_vmem [thread:$0]  %s6, 2048, %s76, [#allocation9], 128, 128, 8
    $region29: #{tpu_custom_call.1} parent=1 // pred_fallthru
      _
    // Predicated region
    $region30: #{tpu_custom_call.1} parent=1 // pred_check
      _
    $region31: #{tpu_custom_call.1} parent=1 // pred_check_branch
      %83 = sbr.rel (0) target = $region33
    $region32: #{tpu_custom_call.1} parent=1 // pred_region
      _
    $region33: #{tpu_custom_call.1} parent=1 // pred_fallthru
      _
    // Predicated region
    $region34: #{tpu_custom_call.1} parent=1 // pred_check
      _
    $region35: #{tpu_custom_call.1} parent=1 // pred_check_branch
      %85 = sbr.rel (0) target = $region37
    $region36: #{tpu_custom_call.1} parent=1 // pred_region
      %s87 = ssub.s32 2048, 2048
      %88 = vsyncadd [#allocation12], %s87
      %s89 = sshll.u32 [#allocation11], 4
      %s90 = int_to_ptr.vmem [resolvable:$true] %s89
      %95 = dma.hbm_to_vmem [thread:$0]  %s8, 2048, %s90, [#allocation12], 128, 128, 8
    $region37: #{tpu_custom_call.1} parent=1 // pred_fallthru
      _
    // Predicated region
    $region38: #{tpu_custom_call.1} parent=1 // pred_check
      _
    $region39: #{tpu_custom_call.1} parent=1 // pred_check_branch
      %97 = sbr.rel (0) target = $region41
    $region40: #{tpu_custom_call.1} parent=1 // pred_region
      _
    $region41: #{tpu_custom_call.1} parent=1 // pred_fallthru
      _
    // Predicated region
    $region42: #{tpu_custom_call.1} parent=1 // pred_check
      _
    $region43: #{tpu_custom_call.1} parent=1 // pred_check_branch
      %99 = sbr.rel (0) target = $region45
    $region44: #{tpu_custom_call.1} parent=1 // pred_region
      %100 = dma.done [#allocation3], 128
    $region45: #{tpu_custom_call.1} parent=1 // pred_fallthru
      _
    // Predicated region
    $region46: #{tpu_custom_call.1} parent=1 // pred_check
      _
    $region47: #{tpu_custom_call.1} parent=1 // pred_check_branch
      %102 = sbr.rel (0) target = $region49
    $region48: #{tpu_custom_call.1} parent=1 // pred_region
      %103 = dma.done [#allocation6], 2048
    $region49: #{tpu_custom_call.1} parent=1 // pred_fallthru
      _
    // Predicated region
    $region50: #{tpu_custom_call.1} parent=1 // pred_check
      _
    $region51: #{tpu_custom_call.1} parent=1 // pred_check_branch
      %105 = sbr.rel (0) target = $region53
    $region52: #{tpu_custom_call.1} parent=1 // pred_region
      %106 = dma.done [#allocation6], 2048
    $region53: #{tpu_custom_call.1} parent=1 // pred_fallthru
      _
    // Predicated region
    $region54: #{tpu_custom_call.1} parent=1 // pred_check
      _
    $region55: #{tpu_custom_call.1} parent=1 // pred_check_branch
      %108 = sbr.rel (0) target = $region57
    $region56: #{tpu_custom_call.1} parent=1 // pred_region
      %109 = dma.done [#allocation9], 2048
    $region57: #{tpu_custom_call.1} parent=1 // pred_fallthru
      _
    // Predicated region
    $region58: #{tpu_custom_call.1} parent=1 // pred_check
      _
    $region59: #{tpu_custom_call.1} parent=1 // pred_check_branch
      %111 = sbr.rel (0) target = $region61
    $region60: #{tpu_custom_call.1} parent=1 // pred_region
      %112 = dma.done [#allocation9], 2048
    $region61: #{tpu_custom_call.1} parent=1 // pred_fallthru
      _
    // Predicated region
    $region62: #{tpu_custom_call.1} parent=1 // pred_check
      _
    $region63: #{tpu_custom_call.1} parent=1 // pred_check_branch
      %114 = sbr.rel (0) target = $region65
    $region64: #{tpu_custom_call.1} parent=1 // pred_region
      %115 = dma.done [#allocation12], 2048
    $region65: #{tpu_custom_call.1} parent=1 // pred_fallthru
      _
    %v116 = vld [vmem:[#allocation2] sm:$0xff]
    %v117 = vld [vmem:[#allocation5] sm:$0xff]
    %v118 = vld [vmem:[#allocation5 + $0x8] sm:$0xff]
    %v119 = vld [vmem:[#allocation5 + $0x10] sm:$0xff]
    %v120 = vld [vmem:[#allocation5 + $0x18] sm:$0xff]
    %v121 = vld [vmem:[#allocation5 + $0x20] sm:$0xff]
    %v122 = vld [vmem:[#allocation5 + $0x28] sm:$0xff]
    %v123 = vld [vmem:[#allocation5 + $0x30] sm:$0xff]
    %v124 = vld [vmem:[#allocation5 + $0x38] sm:$0xff]
    %v125 = vld [vmem:[#allocation5 + $0x40] sm:$0xff]
    %v126 = vld [vmem:[#allocation5 + $0x48] sm:$0xff]
    %v127 = vld [vmem:[#allocation5 + $0x50] sm:$0xff]
    %v128 = vld [vmem:[#allocation5 + $0x58] sm:$0xff]
    %v129 = vld [vmem:[#allocation5 + $0x60] sm:$0xff]
    %v130 = vld [vmem:[#allocation5 + $0x68] sm:$0xff]
    %v131 = vld [vmem:[#allocation5 + $0x70] sm:$0xff]
    %v132 = vld [vmem:[#allocation5 + $0x78] sm:$0xff]
    %v133 = vld [vmem:[%s2] sm:$0x1]
    %v135 = vlaneseq
    %v136 = vshrl.u32 %v135, 7
    %v137 = vsub.s32 0, %v136
    %v138 = vrot.slane %v133, %v137
    %140 = vmatprep.subr.mxu0 0.0
    %141 = vmatpush1.msra.mxu0 %v132
    %142 = vmatprep.subr.mxu0 0.0
    %143 = vmatpush1.msra.mxu0 %v131
    %144 = vmatprep.subr.mxu0 0.0
    %145 = vmatpush1.msra.mxu0 %v130
    %146 = vmatprep.subr.mxu0 0.0
    %147 = vmatpush1.msra.mxu0 %v129
    %148 = vmatprep.subr.mxu0 0.0
    %149 = vmatpush1.msra.mxu0 %v128
    %150 = vmatprep.subr.mxu0 0.0
    %151 = vmatpush1.msra.mxu0 %v127
    %152 = vmatprep.subr.mxu0 0.0
    %153 = vmatpush1.msra.mxu0 %v126
    %154 = vmatprep.subr.mxu0 0.0
    %155 = vmatpush1.msra.mxu0 %v125
    %156 = vmatprep.subr.mxu0 0.0
    %157 = vmatpush1.msra.mxu0 %v124
    %158 = vmatprep.subr.mxu0 0.0
    %159 = vmatpush1.msra.mxu0 %v123
    %160 = vmatprep.subr.mxu0 0.0
    %161 = vmatpush1.msra.mxu0 %v122
    %162 = vmatprep.subr.mxu0 0.0
    %163 = vmatpush1.msra.mxu0 %v121
    %164 = vmatprep.subr.mxu0 0.0
    %165 = vmatpush1.msra.mxu0 %v120
    %166 = vmatprep.subr.mxu0 0.0
    %167 = vmatpush1.msra.mxu0 %v119
    %168 = vmatprep.subr.mxu0 0.0
    %169 = vmatpush1.msra.mxu0 %v118
    %170 = vmatprep.subr.mxu0 0.0
    %171 = vmatpush1.msra.mxu0 %v117
    %172 = vmatprep.subr.mxu0 0.0
    %173 = vmatpush2.msra.mxu0 0.0
    %174 = vmatprep.subr.mxu0 0.0
    %175 = vmatpush2.msra.mxu0 0.0
    %176 = vmatprep.subr.mxu0 0.0
    %177 = vmatpush2.msra.mxu0 0.0
    %178 = vmatprep.subr.mxu0 0.0
    %179 = vmatpush2.msra.mxu0 0.0
    %180 = vmatprep.subr.mxu0 0.0
    %181 = vmatpush2.msra.mxu0 0.0
    %182 = vmatprep.subr.mxu0 0.0
    %183 = vmatpush2.msra.mxu0 0.0
    %184 = vmatprep.subr.mxu0 0.0
    %185 = vmatpush2.msra.mxu0 0.0
    %186 = vmatprep.subr.mxu0 0.0
    %187 = vmatpush2.msra.mxu0 0.0
    %188 = vmatprep.subr.mxu0 0.0
    %189 = vmatpush2.msra.mxu0 0.0
    %190 = vmatprep.subr.mxu0 0.0
    %191 = vmatpush2.msra.mxu0 0.0
    %192 = vmatprep.subr.mxu0 0.0
    %193 = vmatpush2.msra.mxu0 0.0
    %194 = vmatprep.subr.mxu0 0.0
    %195 = vmatpush2.msra.mxu0 0.0
    %196 = vmatprep.subr.mxu0 0.0
    %197 = vmatpush2.msra.mxu0 0.0
    %198 = vmatprep.subr.mxu0 0.0
    %199 = vmatpush2.msra.mxu0 0.0
    %200 = vmatprep.subr.mxu0 0.0
    %201 = vmatpush2.msra.mxu0 0.0
    %202 = vmatprep.subr.mxu0 0.0
    %203 = vmatpush2.msra.mxu0 0.0
    %204 = vmatprep.mubr.f32.mxu0 0.0
    %205 = vmatmul.mubr.f32.gmra.mxu0 %v116
    %v206 = vpop.f32.mrf.mxu0
    %v207 = vadd.f32 %v138, %v206
    %v208 = vpop.f32.mrf.mxu0
    %209 = vdwg.mxu0
    %v210 = vmax.f32 %v207, 0.0
    %v211 = vld [vmem:[#allocation7] sm:$0xff]
    %v212 = vld [vmem:[#allocation7 + $0x8] sm:$0xff]
    %v213 = vld [vmem:[#allocation7 + $0x10] sm:$0xff]
    %v214 = vld [vmem:[#allocation7 + $0x18] sm:$0xff]
    %v215 = vld [vmem:[#allocation7 + $0x20] sm:$0xff]
    %v216 = vld [vmem:[#allocation7 + $0x28] sm:$0xff]
    %v217 = vld [vmem:[#allocation7 + $0x30] sm:$0xff]
    %v218 = vld [vmem:[#allocation7 + $0x38] sm:$0xff]
    %v219 = vld [vmem:[#allocation7 + $0x40] sm:$0xff]
    %v220 = vld [vmem:[#allocation7 + $0x48] sm:$0xff]
    %v221 = vld [vmem:[#allocation7 + $0x50] sm:$0xff]
    %v222 = vld [vmem:[#allocation7 + $0x58] sm:$0xff]
    %v223 = vld [vmem:[#allocation7 + $0x60] sm:$0xff]
    %v224 = vld [vmem:[#allocation7 + $0x68] sm:$0xff]
    %v225 = vld [vmem:[#allocation7 + $0x70] sm:$0xff]
    %v226 = vld [vmem:[#allocation7 + $0x78] sm:$0xff]
    %v227 = vld [vmem:[#allocation8] sm:$0xff]
    %v228 = vld [vmem:[#allocation8 + $0x8] sm:$0xff]
    %v229 = vld [vmem:[#allocation8 + $0x10] sm:$0xff]
    %v230 = vld [vmem:[#allocation8 + $0x18] sm:$0xff]
    %v231 = vld [vmem:[#allocation8 + $0x20] sm:$0xff]
    %v232 = vld [vmem:[#allocation8 + $0x28] sm:$0xff]
    %v233 = vld [vmem:[#allocation8 + $0x30] sm:$0xff]
    %v234 = vld [vmem:[#allocation8 + $0x38] sm:$0xff]
    %v235 = vld [vmem:[#allocation8 + $0x40] sm:$0xff]
    %v236 = vld [vmem:[#allocation8 + $0x48] sm:$0xff]
    %v237 = vld [vmem:[#allocation8 + $0x50] sm:$0xff]
    %v238 = vld [vmem:[#allocation8 + $0x58] sm:$0xff]
    %v239 = vld [vmem:[#allocation8 + $0x60] sm:$0xff]
    %v240 = vld [vmem:[#allocation8 + $0x68] sm:$0xff]
    %v241 = vld [vmem:[#allocation8 + $0x70] sm:$0xff]
    %v242 = vld [vmem:[#allocation8 + $0x78] sm:$0xff]
    %243 = vmatprep.subr.mxu0 0.0
    %244 = vmatpush1.msra.mxu0 %v242
    %245 = vmatprep.subr.mxu0 0.0
    %246 = vmatpush1.msra.mxu0 %v241
    %247 = vmatprep.subr.mxu0 0.0
    %248 = vmatpush1.msra.mxu0 %v240
    %249 = vmatprep.subr.mxu0 0.0
    %250 = vmatpush1.msra.mxu0 %v239
    %251 = vmatprep.subr.mxu0 0.0
    %252 = vmatpush1.msra.mxu0 %v238
    %253 = vmatprep.subr.mxu0 0.0
    %254 = vmatpush1.msra.mxu0 %v237
    %255 = vmatprep.subr.mxu0 0.0
    %256 = vmatpush1.msra.mxu0 %v236
    %257 = vmatprep.subr.mxu0 0.0
    %258 = vmatpush1.msra.mxu0 %v235
    %259 = vmatprep.subr.mxu0 0.0
    %260 = vmatpush1.msra.mxu0 %v234
    %261 = vmatprep.subr.mxu0 0.0
    %262 = vmatpush1.msra.mxu0 %v233
    %263 = vmatprep.subr.mxu0 0.0
    %264 = vmatpush1.msra.mxu0 %v232
    %265 = vmatprep.subr.mxu0 0.0
    %266 = vmatpush1.msra.mxu0 %v231
    %267 = vmatprep.subr.mxu0 0.0
    %268 = vmatpush1.msra.mxu0 %v230
    %269 = vmatprep.subr.mxu0 0.0
    %270 = vmatpush1.msra.mxu0 %v229
    %271 = vmatprep.subr.mxu0 0.0
    %272 = vmatpush1.msra.mxu0 %v228
    %273 = vmatprep.subr.mxu0 0.0
    %274 = vmatpush1.msra.mxu0 %v227
    %275 = vmatprep.subr.mxu0 0.0
    %276 = vmatpush2.msra.mxu0 0.0
    %277 = vmatprep.subr.mxu0 0.0
    %278 = vmatpush2.msra.mxu0 0.0
    %279 = vmatprep.subr.mxu0 0.0
    %280 = vmatpush2.msra.mxu0 0.0
    %281 = vmatprep.subr.mxu0 0.0
    %282 = vmatpush2.msra.mxu0 0.0
    %283 = vmatprep.subr.mxu0 0.0
    %284 = vmatpush2.msra.mxu0 0.0
    %285 = vmatprep.subr.mxu0 0.0
    %286 = vmatpush2.msra.mxu0 0.0
    %287 = vmatprep.subr.mxu0 0.0
    %288 = vmatpush2.msra.mxu0 0.0
    %289 = vmatprep.subr.mxu0 0.0
    %290 = vmatpush2.msra.mxu0 0.0
    %291 = vmatprep.subr.mxu0 0.0
    %292 = vmatpush2.msra.mxu0 0.0
    %293 = vmatprep.subr.mxu0 0.0
    %294 = vmatpush2.msra.mxu0 0.0
    %295 = vmatprep.subr.mxu0 0.0
    %296 = vmatpush2.msra.mxu0 0.0
    %297 = vmatprep.subr.mxu0 0.0
    %298 = vmatpush2.msra.mxu0 0.0
    %299 = vmatprep.subr.mxu0 0.0
    %300 = vmatpush2.msra.mxu0 0.0
    %301 = vmatprep.subr.mxu0 0.0
    %302 = vmatpush2.msra.mxu0 0.0
    %303 = vmatprep.subr.mxu0 0.0
    %304 = vmatpush2.msra.mxu0 0.0
    %305 = vmatprep.subr.mxu0 0.0
    %306 = vmatpush2.msra.mxu0 0.0
    %307 = vmatprep.mubr.f32.mxu0 0.0
    %308 = vmatmul.mubr.f32.gmra.mxu0 %v116
    %v309 = vpop.f32.mrf.mxu0
    %v310 = vadd.f32 0.0, %v309
    %v311 = vpop.f32.mrf.mxu0
    %312 = vdwg.mxu0
    %313 = vmatprep.subr.mxu0 0.0
    %314 = vmatpush1.msra.mxu0 %v226
    %315 = vmatprep.subr.mxu0 0.0
    %316 = vmatpush1.msra.mxu0 %v225
    %317 = vmatprep.subr.mxu0 0.0
    %318 = vmatpush1.msra.mxu0 %v224
    %319 = vmatprep.subr.mxu0 0.0
    %320 = vmatpush1.msra.mxu0 %v223
    %321 = vmatprep.subr.mxu0 0.0
    %322 = vmatpush1.msra.mxu0 %v222
    %323 = vmatprep.subr.mxu0 0.0
    %324 = vmatpush1.msra.mxu0 %v221
    %325 = vmatprep.subr.mxu0 0.0
    %326 = vmatpush1.msra.mxu0 %v220
    %327 = vmatprep.subr.mxu0 0.0
    %328 = vmatpush1.msra.mxu0 %v219
    %329 = vmatprep.subr.mxu0 0.0
    %330 = vmatpush1.msra.mxu0 %v218
    %331 = vmatprep.subr.mxu0 0.0
    %332 = vmatpush1.msra.mxu0 %v217
    %333 = vmatprep.subr.mxu0 0.0
    %334 = vmatpush1.msra.mxu0 %v216
    %335 = vmatprep.subr.mxu0 0.0
    %336 = vmatpush1.msra.mxu0 %v215
    %337 = vmatprep.subr.mxu0 0.0
    %338 = vmatpush1.msra.mxu0 %v214
    %339 = vmatprep.subr.mxu0 0.0
    %340 = vmatpush1.msra.mxu0 %v213
    %341 = vmatprep.subr.mxu0 0.0
    %342 = vmatpush1.msra.mxu0 %v212
    %343 = vmatprep.subr.mxu0 0.0
    %344 = vmatpush1.msra.mxu0 %v211
    %345 = vmatprep.subr.mxu0 0.0
    %346 = vmatpush2.msra.mxu0 0.0
    %347 = vmatprep.subr.mxu0 0.0
    %348 = vmatpush2.msra.mxu0 0.0
    %349 = vmatprep.subr.mxu0 0.0
    %350 = vmatpush2.msra.mxu0 0.0
    %351 = vmatprep.subr.mxu0 0.0
    %352 = vmatpush2.msra.mxu0 0.0
    %353 = vmatprep.subr.mxu0 0.0
    %354 = vmatpush2.msra.mxu0 0.0
    %355 = vmatprep.subr.mxu0 0.0
    %356 = vmatpush2.msra.mxu0 0.0
    %357 = vmatprep.subr.mxu0 0.0
    %358 = vmatpush2.msra.mxu0 0.0
    %359 = vmatprep.subr.mxu0 0.0
    %360 = vmatpush2.msra.mxu0 0.0
    %361 = vmatprep.subr.mxu0 0.0
    %362 = vmatpush2.msra.mxu0 0.0
    %363 = vmatprep.subr.mxu0 0.0
    %364 = vmatpush2.msra.mxu0 0.0
    %365 = vmatprep.subr.mxu0 0.0
    %366 = vmatpush2.msra.mxu0 0.0
    %367 = vmatprep.subr.mxu0 0.0
    %368 = vmatpush2.msra.mxu0 0.0
    %369 = vmatprep.subr.mxu0 0.0
    %370 = vmatpush2.msra.mxu0 0.0
    %371 = vmatprep.subr.mxu0 0.0
    %372 = vmatpush2.msra.mxu0 0.0
    %373 = vmatprep.subr.mxu0 0.0
    %374 = vmatpush2.msra.mxu0 0.0
    %375 = vmatprep.subr.mxu0 0.0
    %376 = vmatpush2.msra.mxu0 0.0
    %377 = vmatprep.mubr.f32.mxu0 0.0
    %378 = vmatmul.mubr.f32.gmra.mxu0 %v210
    %v379 = vpop.f32.mrf.mxu0
    %v380 = vadd.f32 %v310, %v379
    %v381 = vpop.f32.mrf.mxu0
    %382 = vdwg.mxu0
    %v383 = vld [vmem:[%s5] sm:$0x1]
    %v385 = vlaneseq
    %v386 = vshrl.u32 %v385, 7
    %v387 = vsub.s32 0, %v386
    %v388 = vrot.slane %v383, %v387
    %v390 = vadd.f32 %v380, %v388
    %v391 = vmax.f32 %v390, 0.0
    %v392 = vld [vmem:[#allocation10] sm:$0xff]
    %v393 = vld [vmem:[#allocation10 + $0x8] sm:$0xff]
    %v394 = vld [vmem:[#allocation10 + $0x10] sm:$0xff]
    %v395 = vld [vmem:[#allocation10 + $0x18] sm:$0xff]
    %v396 = vld [vmem:[#allocation10 + $0x20] sm:$0xff]
    %v397 = vld [vmem:[#allocation10 + $0x28] sm:$0xff]
    %v398 = vld [vmem:[#allocation10 + $0x30] sm:$0xff]
    %v399 = vld [vmem:[#allocation10 + $0x38] sm:$0xff]
    %v400 = vld [vmem:[#allocation10 + $0x40] sm:$0xff]
    %v401 = vld [vmem:[#allocation10 + $0x48] sm:$0xff]
    %v402 = vld [vmem:[#allocation10 + $0x50] sm:$0xff]
    %v403 = vld [vmem:[#allocation10 + $0x58] sm:$0xff]
    %v404 = vld [vmem:[#allocation10 + $0x60] sm:$0xff]
    %v405 = vld [vmem:[#allocation10 + $0x68] sm:$0xff]
    %v406 = vld [vmem:[#allocation10 + $0x70] sm:$0xff]
    %v407 = vld [vmem:[#allocation10 + $0x78] sm:$0xff]
    %v408 = vld [vmem:[%s7] sm:$0x1]
    %v410 = vlaneseq
    %v411 = vshrl.u32 %v410, 7
    %v412 = vsub.s32 0, %v411
    %v413 = vrot.slane %v408, %v412
    %415 = vmatprep.subr.mxu0 0.0
    %416 = vmatpush1.msra.mxu0 %v407
    %417 = vmatprep.subr.mxu0 0.0
    %418 = vmatpush1.msra.mxu0 %v406
    %419 = vmatprep.subr.mxu0 0.0
    %420 = vmatpush1.msra.mxu0 %v405
    %421 = vmatprep.subr.mxu0 0.0
    %422 = vmatpush1.msra.mxu0 %v404
    %423 = vmatprep.subr.mxu0 0.0
    %424 = vmatpush1.msra.mxu0 %v403
    %425 = vmatprep.subr.mxu0 0.0
    %426 = vmatpush1.msra.mxu0 %v402
    %427 = vmatprep.subr.mxu0 0.0
    %428 = vmatpush1.msra.mxu0 %v401
    %429 = vmatprep.subr.mxu0 0.0
    %430 = vmatpush1.msra.mxu0 %v400
    %431 = vmatprep.subr.mxu0 0.0
    %432 = vmatpush1.msra.mxu0 %v399
    %433 = vmatprep.subr.mxu0 0.0
    %434 = vmatpush1.msra.mxu0 %v398
    %435 = vmatprep.subr.mxu0 0.0
    %436 = vmatpush1.msra.mxu0 %v397
    %437 = vmatprep.subr.mxu0 0.0
    %438 = vmatpush1.msra.mxu0 %v396
    %439 = vmatprep.subr.mxu0 0.0
    %440 = vmatpush1.msra.mxu0 %v395
    %441 = vmatprep.subr.mxu0 0.0
    %442 = vmatpush1.msra.mxu0 %v394
    %443 = vmatprep.subr.mxu0 0.0
    %444 = vmatpush1.msra.mxu0 %v393
    %445 = vmatprep.subr.mxu0 0.0
    %446 = vmatpush1.msra.mxu0 %v392
    %447 = vmatprep.subr.mxu0 0.0
    %448 = vmatpush2.msra.mxu0 0.0
    %449 = vmatprep.subr.mxu0 0.0
    %450 = vmatpush2.msra.mxu0 0.0
    %451 = vmatprep.subr.mxu0 0.0
    %452 = vmatpush2.msra.mxu0 0.0
    %453 = vmatprep.subr.mxu0 0.0
    %454 = vmatpush2.msra.mxu0 0.0
    %455 = vmatprep.subr.mxu0 0.0
    %456 = vmatpush2.msra.mxu0 0.0
    %457 = vmatprep.subr.mxu0 0.0
    %458 = vmatpush2.msra.mxu0 0.0
    %459 = vmatprep.subr.mxu0 0.0
    %460 = vmatpush2.msra.mxu0 0.0
    %461 = vmatprep.subr.mxu0 0.0
    %462 = vmatpush2.msra.mxu0 0.0
    %463 = vmatprep.subr.mxu0 0.0
    %464 = vmatpush2.msra.mxu0 0.0
    %465 = vmatprep.subr.mxu0 0.0
    %466 = vmatpush2.msra.mxu0 0.0
    %467 = vmatprep.subr.mxu0 0.0
    %468 = vmatpush2.msra.mxu0 0.0
    %469 = vmatprep.subr.mxu0 0.0
    %470 = vmatpush2.msra.mxu0 0.0
    %471 = vmatprep.subr.mxu0 0.0
    %472 = vmatpush2.msra.mxu0 0.0
    %473 = vmatprep.subr.mxu0 0.0
    %474 = vmatpush2.msra.mxu0 0.0
    %475 = vmatprep.subr.mxu0 0.0
    %476 = vmatpush2.msra.mxu0 0.0
    %477 = vmatprep.subr.mxu0 0.0
    %478 = vmatpush2.msra.mxu0 0.0
    %479 = vmatprep.mubr.f32.mxu0 0.0
    %480 = vmatmul.mubr.f32.gmra.mxu0 %v391
    %v481 = vpop.f32.mrf.mxu0
    %v482 = vadd.f32 %v413, %v481
    %v483 = vpop.f32.mrf.mxu0
    %484 = vdwg.mxu0
    %v485 = vmax.f32 %v482, 0.0
    %v486 = vld [vmem:[#allocation11] sm:$0xff]
    %v487 = vld [vmem:[#allocation11 + $0x8] sm:$0xff]
    %v488 = vld [vmem:[#allocation11 + $0x10] sm:$0xff]
    %v489 = vld [vmem:[#allocation11 + $0x18] sm:$0xff]
    %v490 = vld [vmem:[#allocation11 + $0x20] sm:$0xff]
    %v491 = vld [vmem:[#allocation11 + $0x28] sm:$0xff]
    %v492 = vld [vmem:[#allocation11 + $0x30] sm:$0xff]
    %v493 = vld [vmem:[#allocation11 + $0x38] sm:$0xff]
    %v494 = vld [vmem:[#allocation11 + $0x40] sm:$0xff]
    %v495 = vld [vmem:[#allocation11 + $0x48] sm:$0xff]
    %v496 = vld [vmem:[#allocation11 + $0x50] sm:$0xff]
    %v497 = vld [vmem:[#allocation11 + $0x58] sm:$0xff]
    %v498 = vld [vmem:[#allocation11 + $0x60] sm:$0xff]
    %v499 = vld [vmem:[#allocation11 + $0x68] sm:$0xff]
    %v500 = vld [vmem:[#allocation11 + $0x70] sm:$0xff]
    %v501 = vld [vmem:[#allocation11 + $0x78] sm:$0xff]
    %v502 = vld [vmem:[%s9] sm:$0x1]
    %v504 = vlaneseq
    %v505 = vshrl.u32 %v504, 7
    %v506 = vsub.s32 0, %v505
    %v507 = vrot.slane %v502, %v506
    %509 = vmatprep.subr.mxu0 0.0
    %510 = vmatpush1.msra.mxu0 %v501
    %511 = vmatprep.subr.mxu0 0.0
    %512 = vmatpush1.msra.mxu0 %v500
    %513 = vmatprep.subr.mxu0 0.0
    %514 = vmatpush1.msra.mxu0 %v499
    %515 = vmatprep.subr.mxu0 0.0
    %516 = vmatpush1.msra.mxu0 %v498
    %517 = vmatprep.subr.mxu0 0.0
    %518 = vmatpush1.msra.mxu0 %v497
    %519 = vmatprep.subr.mxu0 0.0
    %520 = vmatpush1.msra.mxu0 %v496
    %521 = vmatprep.subr.mxu0 0.0
    %522 = vmatpush1.msra.mxu0 %v495
    %523 = vmatprep.subr.mxu0 0.0
    %524 = vmatpush1.msra.mxu0 %v494
    %525 = vmatprep.subr.mxu0 0.0
    %526 = vmatpush1.msra.mxu0 %v493
    %527 = vmatprep.subr.mxu0 0.0
    %528 = vmatpush1.msra.mxu0 %v492
    %529 = vmatprep.subr.mxu0 0.0
    %530 = vmatpush1.msra.mxu0 %v491
    %531 = vmatprep.subr.mxu0 0.0
    %532 = vmatpush1.msra.mxu0 %v490
    %533 = vmatprep.subr.mxu0 0.0
    %534 = vmatpush1.msra.mxu0 %v489
    %535 = vmatprep.subr.mxu0 0.0
    %536 = vmatpush1.msra.mxu0 %v488
    %537 = vmatprep.subr.mxu0 0.0
    %538 = vmatpush1.msra.mxu0 %v487
    %539 = vmatprep.subr.mxu0 0.0
    %540 = vmatpush1.msra.mxu0 %v486
    %541 = vmatprep.subr.mxu0 0.0
    %542 = vmatpush2.msra.mxu0 0.0
    %543 = vmatprep.subr.mxu0 0.0
    %544 = vmatpush2.msra.mxu0 0.0
    %545 = vmatprep.subr.mxu0 0.0
    %546 = vmatpush2.msra.mxu0 0.0
    %547 = vmatprep.subr.mxu0 0.0
    %548 = vmatpush2.msra.mxu0 0.0
    %549 = vmatprep.subr.mxu0 0.0
    %550 = vmatpush2.msra.mxu0 0.0
    %551 = vmatprep.subr.mxu0 0.0
    %552 = vmatpush2.msra.mxu0 0.0
    %553 = vmatprep.subr.mxu0 0.0
    %554 = vmatpush2.msra.mxu0 0.0
    %555 = vmatprep.subr.mxu0 0.0
    %556 = vmatpush2.msra.mxu0 0.0
    %557 = vmatprep.subr.mxu0 0.0
    %558 = vmatpush2.msra.mxu0 0.0
    %559 = vmatprep.subr.mxu0 0.0
    %560 = vmatpush2.msra.mxu0 0.0
    %561 = vmatprep.subr.mxu0 0.0
    %562 = vmatpush2.msra.mxu0 0.0
    %563 = vmatprep.subr.mxu0 0.0
    %564 = vmatpush2.msra.mxu0 0.0
    %565 = vmatprep.subr.mxu0 0.0
    %566 = vmatpush2.msra.mxu0 0.0
    %567 = vmatprep.subr.mxu0 0.0
    %568 = vmatpush2.msra.mxu0 0.0
    %569 = vmatprep.subr.mxu0 0.0
    %570 = vmatpush2.msra.mxu0 0.0
    %571 = vmatprep.subr.mxu0 0.0
    %572 = vmatpush2.msra.mxu0 0.0
    %573 = vmatprep.mubr.f32.mxu0 0.0
    %574 = vmatmul.mubr.f32.gmra.mxu0 %v485
    %v575 = vpop.f32.mrf.mxu0
    %v576 = vadd.f32 %v507, %v575
    %v577 = vpop.f32.mrf.mxu0
    %578 = vdwg.mxu0
    %579 = vst [vmem:[#allocation13] sm:$0xff] %v576
    // Predicated region
    $region66: #{tpu_custom_call.1} parent=1 // pred_check
      _
    $region67: #{tpu_custom_call.1} parent=1 // pred_check_branch
      %581 = sbr.rel (0) target = $region69
    $region68: #{tpu_custom_call.1} parent=1 // pred_region
      %s583 = ssub.s32 128, 128
      %584 = vsyncadd [#allocation4], %s583
      %s586 = sshll.u32 [#allocation13], 4
      %s587 = int_to_ptr.vmem [resolvable:$true] %s586
      %589 = dma.vmem_to_hbm [thread:$0]  %s587, 128, %s10, [#allocation4]
    $region69: #{tpu_custom_call.1} parent=1 // pred_fallthru
      _
    // Predicated region
    $region70: #{tpu_custom_call.1} parent=1 // pred_check
      _
    $region71: #{tpu_custom_call.1} parent=1 // pred_check_branch
      %591 = sbr.rel (0) target = $region73
    $region72: #{tpu_custom_call.1} parent=1 // pred_region
      %592 = dma.done [#allocation4], 128
    $region73: #{tpu_custom_call.1} parent=1 // pred_fallthru
      _
    %593 = vsyncpa [#allocation3], 1
    %594 = vsyncpa [#allocation6], 1
    %595 = vsyncpa [#allocation9], 1
    %596 = vsyncpa [#allocation12], 1
    %597 = vsyncpa [#allocation4], 1

</llo_original>
